<compile_context>
chip_gen: v7x
topology: tpu7x:2x2x1
jax: 0.10.0
libtpu: 0.0.40
codegen_flags: <defaults>
</compile_context>

<pallas_src>
import jax
import jax.numpy as jnp
from jax.experimental import pallas as pl
from jax.experimental.pallas import tpu as pltpu


def _make_fused_kernel(compute_dtype):
    """Fused per-batch-block kernel: o = A @ x @ B for every batch element."""

    def kernel(a_ref, b_ref, x_ref, o_ref):
        x = x_ref[...]          # (bb, T, N)
        a = a_ref[...]          # (T, T)   VMEM-resident across the whole grid
        bmat = b_ref[...]       # (N, N)   VMEM-resident across the whole grid

        if compute_dtype is not None:
            # Cast operands in-kernel only (saves an HBM pass vs wrapper cast);
            # accumulation below stays f32 via preferred_element_type.
            x = x.astype(compute_dtype)
            a = a.astype(compute_dtype)
            bmat = bmat.astype(compute_dtype)

        bb = x.shape[0]
        a3 = jnp.broadcast_to(a[None], (bb,) + a.shape)        # (bb, T, T)
        b3 = jnp.broadcast_to(bmat[None], (bb,) + bmat.shape)  # (bb, N, N)

        # Stage 1: y[b,t,n] = sum_s A[t,s] * x[b,s,n]   (batched MXU matmul)
        y = jnp.einsum("bts,bsn->btn", a3, x,
                       preferred_element_type=jnp.float32)
        if compute_dtype is not None:
            # Cross-stage intermediate is rounded to compute_dtype (documented).
            y = y.astype(compute_dtype)

        # Stage 2: out[b,t,m] = sum_n y[b,t,n] * B[n,m]  (batched MXU matmul)
        out = jnp.einsum("btn,bnm->btm", y, b3,
                         preferred_element_type=jnp.float32)

        # Single reduction step -> no accumulator scratch, store directly.
        o_ref[...] = out.astype(o_ref.dtype)

    return kernel


def _choose_batch_grid(batch, per_elem_bytes, *, target_block_bytes=2 << 20,
                       min_blocks=2):
    """Pick (bb, nblocks) for the 1-D grid over the batch dimension.

    bb is a leading (non-vreg) block dim, so no sublane/lane alignment is
    needed; the last two block dims are always the full (T, N) extents.
    """
    nblocks = max(1, pl.cdiv(batch * per_elem_bytes, target_block_bytes))
    if batch >= min_blocks:
        # At least 2 blocks so a megacore/parallel split keeps both TCs busy.
        nblocks = max(nblocks, min_blocks)
    nblocks = min(nblocks, batch)
    bb = pl.cdiv(batch, nblocks)
    nblocks = pl.cdiv(batch, bb)
    return bb, nblocks


def mar_regressor_forward(A, B, res_t_s, *, compute_dtype=None,
                          force_pallas=False, min_pallas_elems=32 * 1024):
    """Computes A @ res_t_s @ B per batch (same semantics as the torch forward).

    compute_dtype: optional (e.g. jnp.bfloat16) in-kernel cast of the matmul
      operands; MXU accumulation stays f32, but the cross-stage intermediate y
      is rounded to compute_dtype.
    force_pallas: bypass the small-problem einsum fallback.
    """
    batch, T, N = res_t_s.shape
    assert A.shape == (T, T)
    assert B.shape == (N, N)
    out_dtype = jnp.result_type(A.dtype, B.dtype, res_t_s.dtype)

    # Tiny problems: pallas_call launch overhead dominates; use fused XLA path.
    if not force_pallas and batch * T * N < min_pallas_elems:
        y = jnp.einsum("ts,bsn->btn", A, res_t_s)
        return jnp.einsum("btn,nm->btm", y, B).astype(out_dtype)

    x = res_t_s
    in_itemsize = jnp.dtype(x.dtype).itemsize
    out_itemsize = jnp.dtype(out_dtype).itemsize
    per_elem_bytes = T * N * (in_itemsize + out_itemsize)

    bb, nblocks = _choose_batch_grid(batch, per_elem_bytes)

    # Ragged batch: pad to a block multiple (instead of a full-dim fallback
    # block that could blow past scoped VMEM), slice the result afterwards.
    padded_batch = bb * nblocks
    if padded_batch != batch:
        x = jnp.pad(x, ((0, padded_batch - batch), (0, 0), (0, 0)))

    # VMEM footprint: double-buffered x/out blocks + double-buffered A/B.
    a_bytes = T * T * jnp.dtype(A.dtype).itemsize
    b_bytes = N * N * jnp.dtype(B.dtype).itemsize
    block_bytes = bb * T * N * (in_itemsize + out_itemsize)
    vmem_est = 2 * block_bytes + 2 * (a_bytes + b_bytes) + (1 << 20)
    vmem_limit = int(min(max(2 * vmem_est, 32 << 20), 56 << 20))  # v7x-safe cap

    cost = pl.CostEstimate(
        flops=2 * batch * T * N * (T + N),
        bytes_accessed=batch * T * N * (in_itemsize + out_itemsize)
        + a_bytes + b_bytes,
        transcendentals=0,
    )

    kernel = _make_fused_kernel(compute_dtype)

    out = pl.pallas_call(
        kernel,
        out_shape=jax.ShapeDtypeStruct((padded_batch, T, N), out_dtype),
        grid_spec=pltpu.PrefetchScalarGridSpec(
            num_scalar_prefetch=0,
            grid=(nblocks,),
            in_specs=[
                pl.BlockSpec((T, T), lambda i: (0, 0)),      # A, VMEM-resident
                pl.BlockSpec((N, N), lambda i: (0, 0)),      # B, VMEM-resident
                pl.BlockSpec((bb, T, N), lambda i: (i, 0, 0)),
            ],
            out_specs=pl.BlockSpec((bb, T, N), lambda i: (i, 0, 0)),
        ),
        compiler_params=pltpu.CompilerParams(
            dimension_semantics=("parallel",),
            vmem_limit_bytes=vmem_limit,
        ),
        cost_estimate=cost,
    )(A, B, x)

    if padded_batch != batch:
        out = out[:batch]
    return out


def init_mar_params(num_nodes, seq_length, init="diagonal", scaling=0.001,
                    key=None, dtype=jnp.float32):
    """Deterministic re-implementation of mar_regressor.__init__ parameter init."""
    if key is None:
        key = jax.random.PRNGKey(0)
    ka, kb = jax.random.split(key)
    if init == "random":
        A = jax.random.normal(ka, (seq_length, seq_length), dtype) * scaling
        B = jax.random.normal(kb, (num_nodes, num_nodes), dtype) * scaling
    elif init == "zeros":
        A = jnp.zeros((seq_length, seq_length), dtype)
        B = jnp.zeros((num_nodes, num_nodes), dtype)
    elif init == "diagonal":
        A = jnp.eye(seq_length, dtype=dtype) * scaling
        B = jnp.eye(num_nodes, dtype=dtype) * scaling
    else:
        A = jax.random.normal(ka, (seq_length, seq_length), dtype) * scaling
        B = jnp.eye(num_nodes, dtype=dtype) * scaling
    return A, B


if __name__ == "__main__":
    # Small shapes consistent with the module: batch=2, seq_length=8, num_nodes=16.
    batch, seq_length, num_nodes = 2, 8, 16

    key = jax.random.PRNGKey(0)
    k_param, k_in, k_in2 = jax.random.split(key, 3)

    # Use the 'random' init with a larger scaling so the numeric check is
    # non-trivial (diagonal*0.001 would make allclose vacuous).
    A, B = init_mar_params(num_nodes, seq_length, init="random",
                           scaling=0.1, key=k_param)
    res_t_s = jax.random.normal(k_in, (batch, seq_length, num_nodes), jnp.float32)

    # Reference in plain JAX (same semantics as torch: A @ x @ B per batch).
    ref = jnp.einsum("ts,bsn->btn", A, res_t_s)
    ref = jnp.einsum("btn,nm->btm", ref, B)

    # f32 fused Pallas path (forced: the small-shape fallback would kick in).
    out = mar_regressor_forward(A, B, res_t_s, force_pallas=True)
    out = jax.block_until_ready(out)
    assert out.shape == (batch, seq_length, num_nodes)
    assert jnp.allclose(out, ref, atol=1e-5, rtol=1e-5)

    # Ragged batch exercises the pad+slice path and a multi-step grid.
    batch2 = 5
    x2 = jax.random.normal(k_in2, (batch2, seq_length, num_nodes), jnp.float32)
    ref2 = jnp.einsum("ts,bsn->btn", A, x2)
    ref2 = jnp.einsum("btn,nm->btm", ref2, B)
    out2 = mar_regressor_forward(A, B, x2, force_pallas=True)
    out2 = jax.block_until_ready(out2)
    assert out2.shape == (batch2, seq_length, num_nodes)
    assert jnp.allclose(out2, ref2, atol=1e-5, rtol=1e-5)

    # In-kernel bf16-operand path (f32 MXU accumulation), looser tolerance.
    out_bf16 = mar_regressor_forward(A, B, res_t_s, compute_dtype=jnp.bfloat16,
                                     force_pallas=True)
    out_bf16 = jax.block_until_ready(out_bf16)
    assert jnp.allclose(out_bf16, ref, rtol=5e-2, atol=5e-3)

    print("KERNEL_OK")
</pallas_src>

<mosaic_0001>
module attributes {stable_mosaic.version = 11 : i64} {
  func.func @kernel(%arg0: i32, %arg1: memref<8x8xf32, #tpu.memory_space<vmem>>, %arg2: memref<16x16xf32, #tpu.memory_space<vmem>>, %arg3: memref<1x8x16xf32, #tpu.memory_space<vmem>>, %arg4: memref<1x8x16xf32, #tpu.memory_space<vmem>>) attributes {dimension_semantics = [#tpu.dimension_semantics<parallel>], iteration_bounds = array<i64: 2>, scalar_prefetch = 0 : i64, scratch_operands = 0 : i64, tpu.core_type = #tpu.core_type<tc>, window_params = [{pipeline_mode = #tpu.pipeline_mode<synchronous>, transform_indices = @transform_0, window_bounds = array<i64: 8, 8>}, {pipeline_mode = #tpu.pipeline_mode<synchronous>, transform_indices = @transform_1, window_bounds = array<i64: 16, 16>}, {transform_indices = @transform_2, window_bounds = array<i64: 1, 8, 16>}, {transform_indices = @transform_3, window_bounds = array<i64: 1, 8, 16>}]} {
    %c0 = arith.constant 0 : index
    %c0_0 = arith.constant 0 : index
    %c0_1 = arith.constant 0 : index
    %0 = vector.load %arg3[%c0, %c0_0, %c0_1] : memref<1x8x16xf32, #tpu.memory_space<vmem>>, vector<1x8x16xf32>
    %c0_2 = arith.constant 0 : index
    %c0_3 = arith.constant 0 : index
    %1 = vector.load %arg1[%c0_2, %c0_3] : memref<8x8xf32, #tpu.memory_space<vmem>>, vector<8x8xf32>
    %c0_4 = arith.constant 0 : index
    %c0_5 = arith.constant 0 : index
    %2 = vector.load %arg2[%c0_4, %c0_5] : memref<16x16xf32, #tpu.memory_space<vmem>>, vector<16x16xf32>
    %3 = vector.shape_cast %1 : vector<8x8xf32> to vector<1x8x8xf32>
    %4 = vector.shape_cast %2 : vector<16x16xf32> to vector<1x16x16xf32>
    "tpu.trace_start"() <{level = 10 : i32, message = "bts,bsn->btn"}> : () -> ()
    %cst = arith.constant dense<0.000000e+00> : vector<1x8x16xf32>
    %5 = tpu.matmul %3, %0, %cst {dimension_numbers = #tpu.dot_dimension_numbers<[2], [1], [1], [2], [0, 0, 0, 1, 1, 2], [0], [0]>} : vector<1x8x8xf32>, vector<1x8x16xf32>, vector<1x8x16xf32> -> vector<1x8x16xf32>
    "tpu.trace_stop"() : () -> ()
    "tpu.trace_start"() <{level = 10 : i32, message = "btn,bnm->btm"}> : () -> ()
    %cst_6 = arith.constant dense<0.000000e+00> : vector<1x8x16xf32>
    %6 = tpu.matmul %5, %4, %cst_6 {dimension_numbers = #tpu.dot_dimension_numbers<[2], [1], [1], [2], [0, 0, 0, 1, 1, 2], [0], [0]>} : vector<1x8x16xf32>, vector<1x16x16xf32>, vector<1x8x16xf32> -> vector<1x8x16xf32>
    "tpu.trace_stop"() : () -> ()
    %c0_7 = arith.constant 0 : index
    %c0_8 = arith.constant 0 : index
    %c0_9 = arith.constant 0 : index
    %7 = vector.load %arg4[%c0_7, %c0_8, %c0_9] : memref<1x8x16xf32, #tpu.memory_space<vmem>>, vector<1x8x16xf32>
    tpu.vector_store %arg4[%c0_7, %c0_8, %c0_9], %6 {strides = array<i32>} : memref<1x8x16xf32, #tpu.memory_space<vmem>>, vector<1x8x16xf32>,
    return
  }
  func.func @transform_0(%arg0: i32) -> (i32, i32) {
    %c0_i32 = arith.constant 0 : i32
    %c0_i32_0 = arith.constant 0 : i32
    %c0_i32_1 = arith.constant 0 : i32
    return %c0_i32, %c0_i32_0 : i32, i32
  }
  func.func @transform_1(%arg0: i32) -> (i32, i32) {
    %c0_i32 = arith.constant 0 : i32
    %c0_i32_0 = arith.constant 0 : i32
    %c0_i32_1 = arith.constant 0 : i32
    return %c0_i32, %c0_i32_0 : i32, i32
  }
  func.func @transform_2(%arg0: i32) -> (i32, i32, i32) {
    %c0_i32 = arith.constant 0 : i32
    %c0_i32_0 = arith.constant 0 : i32
    %c0_i32_1 = arith.constant 0 : i32
    return %arg0, %c0_i32, %c0_i32_0 : i32, i32, i32
  }
  func.func @transform_3(%arg0: i32) -> (i32, i32, i32) {
    %c0_i32 = arith.constant 0 : i32
    %c0_i32_0 = arith.constant 0 : i32
    %c0_i32_1 = arith.constant 0 : i32
    return %arg0, %c0_i32, %c0_i32_0 : i32, i32, i32
  }
}

</mosaic_0001>

<llo_original>
// kernel: tpu_custom_call.1
$region0: #{tpu_custom_call.1}
  #allocation0 [shape = 'u32[]', space=smem, size = 0x4, offset = 0x4, fixed_abs, tag = 'smem constant byte address 0x4 - core index']
  #allocation1 [shape = 'u32[144,128]{1,0:T(1,128)}', space=vmem, size = 0x12000, scoped, tag = 'internal scratch']
  %s0 = inlined_call_operand.hbm [shape: f32[8,8], index: 0, kind: input, shape index: {}]
  %s1 = inlined_call_operand.hbm [shape: f32[16,16], index: 1, kind: input, shape index: {}]
  %s2 = inlined_call_operand.hbm [shape: f32[2,8,16], index: 2, kind: input, shape index: {}]
  %s3 = inlined_call_operand.hbm [shape: f32[2,8,16], index: 3, kind: output, shape index: {}]
  %s4 = sld [smem:[#allocation0]]
  $region57: #{tpu_custom_call.1} parent=0
    _
  %s6 = ssub.s32 1, %s4
  %s7 = scalar_select 0, %s6, %s4
  $region1: #{tpu_custom_call.1} parent=0
    #allocation2 [shape = 'u8[4096]{0}', space=vmem, size = 0x1000, scoped, tag = 'input window, operand 0, single buffered']
    #allocation3 [shape = 's32[2]{0}', space=sflag, size = 0x8, scoped, tag = 'scoped memory for tpu_custom_call.1']
    #allocation4 [shape = 's32[2]{0}', space=sflag, size = 0x8, scoped, tag = 'scoped memory for tpu_custom_call.1']
    #allocation5 [shape = 'u8[8192]{0}', space=vmem, size = 0x2000, scoped, tag = 'input window, operand 1, single buffered']
    #allocation6 [shape = 's32[1]{0}', space=sflag, size = 0x4, scoped, tag = 'scoped memory for tpu_custom_call.1']
    #allocation7 [shape = 'u8[8192]{0}', space=vmem, size = 0x2000, scoped, tag = 'input window, operand 2']
    #allocation8 [shape = 'u8[8192]{0}', space=vmem, size = 0x2000, scoped, tag = 'output window, operand 0']
    %8 = vsyncpa [#allocation3], 0
    %9 = vsyncpa [#allocation6], 0
    %10 = vsyncpa [#allocation4], 0
    %s11 = scalar_lea.sflag [#allocation4], 1
    %12 = vsyncpa %s11, 0
    loop: start=0, step=1, limit=4
    $region2: #{tpu_custom_call.1} parent=1 // loop_pre_header
      _
    $region3: #{tpu_custom_call.1} parent=1 // loop_header
      %s14 = sphi 0, %s18
      %p15 = scmp.ge.s32.totalorder %s14, 4
      %s22 = sphi 0, %s22
      %s24 = sphi 0, %s22
      %s25 = sphi 0, %s24
      %s39 = sphi 0, %s25
      %s43 = sphi 0, %s43
      %s45 = sphi 0, %s43
      %s46 = sphi 0, %s45
      %s60 = sphi 0, %s46
      %s66 = sphi 0, %s68
      %s69 = sphi 0, %s66
      %s70 = sphi 0, %s69
      %s86 = sphi 0, %s70
      %s92 = sphi 0, %s94
      %s95 = sphi 0, %s92
      %s96 = sphi 0, %s95
      %s112 = sphi 0, %s96
    $region4: #{tpu_custom_call.1} parent=1 // loop_header_branch
      %17 = sbr.rel (%p15) target = $region8
    $region5: #{tpu_custom_call.1} parent=1 // loop_body
      %s19 = ssub.s32 %s14, 1
      %s20 = ssub.s32 %s14, 2
      %s21 = sadd.s32 %s14, 1
      %s23 = sadd.s32 %s22, 1
      %p26 = scmp.eq.s32.totalorder %s14, 1
      %p27 = scmp.ne.s32.totalorder %s22, %s24
      %p28 = scmp.eq.s32.totalorder %s14, 0
      %p29 = por %p27, %p28
      %p30 = scmp.ne.s32.totalorder %s22, %s24
      %p31 = scmp.eq.s32.totalorder %s19, 1
      %p32 = por %p30, %p31
      %p33 = scmp.ne.s32.totalorder %s24, %s25
      %p34 = scmp.eq.s32.totalorder %s19, 0
      %p35 = por %p33, %p34
      %p36 = scmp.ne.s32.totalorder %s24, %s25
      %p37 = scmp.eq.s32.totalorder %s20, 1
      %p38 = por %p36, %p37
      %p40 = scmp.ne.s32.totalorder %s25, %s39
      %p41 = scmp.eq.s32.totalorder %s20, 0
      %p42 = por %p40, %p41
      %s44 = sadd.s32 %s43, 1
      %p47 = scmp.eq.s32.totalorder %s14, 1
      %p48 = scmp.ne.s32.totalorder %s43, %s45
      %p49 = scmp.eq.s32.totalorder %s14, 0
      %p50 = por %p48, %p49
      %p51 = scmp.ne.s32.totalorder %s43, %s45
      %p52 = scmp.eq.s32.totalorder %s19, 1
      %p53 = por %p51, %p52
      %p54 = scmp.ne.s32.totalorder %s45, %s46
      %p55 = scmp.eq.s32.totalorder %s19, 0
      %p56 = por %p54, %p55
      %p57 = scmp.ne.s32.totalorder %s45, %s46
      %p58 = scmp.eq.s32.totalorder %s20, 1
      %p59 = por %p57, %p58
      %p61 = scmp.ne.s32.totalorder %s46, %s60
      %p62 = scmp.eq.s32.totalorder %s20, 0
      %p63 = por %p61, %p62
      %s64 = ssub.s32 %s14, %s21
      %p65 = scmp.eq.s32.totalorder %s64, 0
      %s67 = sadd.s32 %s66, 1
      %s68 = scalar_select %p65, %s66, %s67
      %p71 = pneg %p65
      %p72 = scmp.eq.s32.totalorder %s14, 1
      %p73 = por %p71, %p72
      %p74 = scmp.ne.s32.totalorder %s66, %s69
      %p75 = scmp.eq.s32.totalorder %s14, 0
      %p76 = por %p74, %p75
      %p77 = scmp.ne.s32.totalorder %s66, %s69
      %p78 = scmp.eq.s32.totalorder %s19, 1
      %p79 = por %p77, %p78
      %p80 = scmp.ne.s32.totalorder %s69, %s70
      %p81 = scmp.eq.s32.totalorder %s19, 0
      %p82 = por %p80, %p81
      %p83 = scmp.ne.s32.totalorder %s69, %s70
      %p84 = scmp.eq.s32.totalorder %s20, 1
      %p85 = por %p83, %p84
      %p87 = scmp.ne.s32.totalorder %s70, %s86
      %p88 = scmp.eq.s32.totalorder %s20, 0
      %p89 = por %p87, %p88
      %s90 = ssub.s32 %s14, %s21
      %p91 = scmp.eq.s32.totalorder %s90, 0
      %s93 = sadd.s32 %s92, 1
      %s94 = scalar_select %p91, %s92, %s93
      %p97 = pneg %p91
      %p98 = scmp.eq.s32.totalorder %s14, 1
      %p99 = por %p97, %p98
      %p100 = scmp.ne.s32.totalorder %s92, %s95
      %p101 = scmp.eq.s32.totalorder %s14, 0
      %p102 = por %p100, %p101
      %p103 = scmp.ne.s32.totalorder %s92, %s95
      %p104 = scmp.eq.s32.totalorder %s19, 1
      %p105 = por %p103, %p104
      %p106 = scmp.ne.s32.totalorder %s95, %s96
      %p107 = scmp.eq.s32.totalorder %s19, 0
      %p108 = por %p106, %p107
      %p109 = scmp.ne.s32.totalorder %s95, %s96
      %p110 = scmp.eq.s32.totalorder %s20, 1
      %p111 = por %p109, %p110
      %p113 = scmp.ne.s32.totalorder %s96, %s112
      %p114 = scmp.eq.s32.totalorder %s20, 0
      %p115 = por %p113, %p114
      %p116 = scmp.le.s32.totalorder 1, %s14
      %p117 = scmp.lt.s32.totalorder %s14, 3
      %p118 = pnand %p116, %p117
      %p119 = pneg %p118
      // Predicated region
      $region9: #{tpu_custom_call.1} parent=5 // pred_check
        _
      $region10: #{tpu_custom_call.1} parent=5 // pred_check_branch
        %121 = sbr.rel (%p118) target = $region12
      $region11: #{tpu_custom_call.1} parent=5 // pred_region
        %s122 = ssub.s32 %s14, 1
        // Predicated region
        $region13: #{tpu_custom_call.1} parent=11 // pred_check
          %p123 = pneg %p35
        $region14: #{tpu_custom_call.1} parent=11 // pred_check_branch
          %125 = sbr.rel (%p123) target = $region16
        $region15: #{tpu_custom_call.1} parent=11 // pred_region
          %s127 = ssub.s32 128, 128
          %128 = vsyncadd [#allocation3], %s127
          %s130 = sshll.u32 [#allocation2], 4
          %s131 = int_to_ptr.vmem [resolvable:$true] %s130
          %133 = dma.hbm_to_vmem [thread:$0]  %s0, 128, %s131, [#allocation3]
        $region16: #{tpu_custom_call.1} parent=11 // pred_fallthru
          _
        // Predicated region
        $region17: #{tpu_custom_call.1} parent=11 // pred_check
          %p134 = pneg %p56
        $region18: #{tpu_custom_call.1} parent=11 // pred_check_branch
          %136 = sbr.rel (%p134) target = $region20
        $region19: #{tpu_custom_call.1} parent=11 // pred_region
          %s138 = ssub.s32 256, 256
          %139 = vsyncadd [#allocation6], %s138
          %s140 = sshll.u32 [#allocation5], 4
          %s141 = int_to_ptr.vmem [resolvable:$true] %s140
          %146 = dma.hbm_to_vmem [thread:$0]  %s1, 256, %s141, [#allocation6], 128, 128, 8
        $region20: #{tpu_custom_call.1} parent=11 // pred_fallthru
          _
      $region12: #{tpu_custom_call.1} parent=5 // pred_fallthru
        _
      %p147 = scmp.lt.s32.totalorder %s14, 2
      // Predicated region
      $region21: #{tpu_custom_call.1} parent=5 // pred_check
        %p148 = pneg %p147
      $region22: #{tpu_custom_call.1} parent=5 // pred_check_branch
        %150 = sbr.rel (%p148) target = $region24
      $region23: #{tpu_custom_call.1} parent=5 // pred_region
        // Predicated region
        $region25: #{tpu_custom_call.1} parent=23 // pred_check
          %p151 = pneg %p76
        $region26: #{tpu_custom_call.1} parent=23 // pred_check_branch
          %153 = sbr.rel (%p151) target = $region28
        $region27: #{tpu_custom_call.1} parent=23 // pred_region
          %s154 = sand.u32 %s14, 1
          %s155 = scalar_lea.sflag [#allocation3], %s154
          %s156 = sand.u32 %s66, 1
          %s157 = smul.addr %s156, 8
          %s158 = scalar_lea.vmem [#allocation7], %s157
          %s160 = ssub.s32 128, 128
          %161 = vsyncadd %s155, %s160
          %s162 = smul.addr %s14, 128
          %s163 = scalar_lea.hbm %s2, %s162
          %s165 = sshll.u32 %s158, 4
          %s166 = int_to_ptr.vmem [resolvable:$true] %s165
          %168 = dma.hbm_to_vmem [thread:$0]  %s163, 128, %s166, %s155
        $region28: #{tpu_custom_call.1} parent=23 // pred_fallthru
          _
      $region24: #{tpu_custom_call.1} parent=5 // pred_fallthru
        _
      %p169 = scmp.le.s32.totalorder 1, %s14
      %p170 = scmp.lt.s32.totalorder %s14, 3
      %p171 = pnand %p169, %p170
      %p172 = pneg %p171
      // Predicated region
      $region29: #{tpu_custom_call.1} parent=5 // pred_check
        _
      $region30: #{tpu_custom_call.1} parent=5 // pred_check_branch
        %174 = sbr.rel (%p171) target = $region32
      $region31: #{tpu_custom_call.1} parent=5 // pred_region
        %s175 = ssub.s32 %s14, 1
        // Predicated region
        $region33: #{tpu_custom_call.1} parent=31 // pred_check
          %p176 = pneg %p35
        $region34: #{tpu_custom_call.1} parent=31 // pred_check_branch
          %178 = sbr.rel (%p176) target = $region36
        $region35: #{tpu_custom_call.1} parent=31 // pred_region
          %179 = dma.done [#allocation3], 128
        $region36: #{tpu_custom_call.1} parent=31 // pred_fallthru
          _
        // Predicated region
        $region37: #{tpu_custom_call.1} parent=31 // pred_check
          %p180 = pneg %p56
        $region38: #{tpu_custom_call.1} parent=31 // pred_check_branch
          %182 = sbr.rel (%p180) target = $region40
        $region39: #{tpu_custom_call.1} parent=31 // pred_region
          %183 = dma.done [#allocation6], 256
        $region40: #{tpu_custom_call.1} parent=31 // pred_fallthru
          _
        %s184 = sand.u32 %s19, 1
        %s185 = scalar_lea.sflag [#allocation3], %s184
        %s186 = sand.u32 %s69, 1
        %s187 = smul.addr %s186, 8
        %s188 = scalar_lea.vmem [#allocation7], %s187
        // Predicated region
        $region41: #{tpu_custom_call.1} parent=31 // pred_check
          %p189 = pneg %p82
        $region42: #{tpu_custom_call.1} parent=31 // pred_check_branch
          %191 = sbr.rel (%p189) target = $region44
        $region43: #{tpu_custom_call.1} parent=31 // pred_region
          %192 = dma.done %s185, 128
        $region44: #{tpu_custom_call.1} parent=31 // pred_fallthru
          _
        %p193 = pneg %p35
        %p194 = pneg %p32
        %p195 = pneg %p56
        %p196 = pneg %p53
        %s197 = sand.u32 %s19, 1
        %s198 = scalar_lea.sflag [#allocation3], %s197
        %s199 = sand.u32 %s69, 1
        %s200 = smul.addr %s199, 8
        %s201 = scalar_lea.vmem [#allocation7], %s200
        %p202 = pneg %p82
        %p203 = pneg %p79
        %p204 = pneg %p108
        %p205 = pneg %p105
        %s206 = sand.u32 %s95, 1
        %s207 = scalar_lea.sflag [#allocation4], %s206
        %s208 = sand.u32 %s95, 1
        %s209 = smul.addr %s208, 8
        %s210 = scalar_lea.vmem [#allocation8], %s209
        %v211 = vld [vmem:[%s188] sm:$0xff]
        %v212 = vld [vmem:[#allocation2] sm:$0xff]
        %v213 = vld [vmem:[#allocation5] sm:$0xff]
        %v214 = vld [vmem:[#allocation5 + $0x8] sm:$0xff]
        %vm215 = vcmask 64512
        %v217 = vsel %vm215, %v212, 0
        %219 = vmatprep.subr.mxu0 0.0
        %220 = vmatpush1.msra.mxu0 %v211
        %221 = vmatprep.subr.mxu0 0.0
        %222 = vmatpush1.msra.mxu0 0.0
        %223 = vmatprep.subr.mxu0 0.0
        %224 = vmatpush1.msra.mxu0 0.0
        %225 = vmatprep.subr.mxu0 0.0
        %226 = vmatpush1.msra.mxu0 0.0
        %227 = vmatprep.subr.mxu0 0.0
        %228 = vmatpush1.msra.mxu0 0.0
        %229 = vmatprep.subr.mxu0 0.0
        %230 = vmatpush1.msra.mxu0 0.0
        %231 = vmatprep.subr.mxu0 0.0
        %232 = vmatpush1.msra.mxu0 0.0
        %233 = vmatprep.subr.mxu0 0.0
        %234 = vmatpush1.msra.mxu0 0.0
        %235 = vmatprep.subr.mxu0 0.0
        %236 = vmatpush1.msra.mxu0 0.0
        %237 = vmatprep.subr.mxu0 0.0
        %238 = vmatpush1.msra.mxu0 0.0
        %239 = vmatprep.subr.mxu0 0.0
        %240 = vmatpush1.msra.mxu0 0.0
        %241 = vmatprep.subr.mxu0 0.0
        %242 = vmatpush1.msra.mxu0 0.0
        %243 = vmatprep.subr.mxu0 0.0
        %244 = vmatpush1.msra.mxu0 0.0
        %245 = vmatprep.subr.mxu0 0.0
        %246 = vmatpush1.msra.mxu0 0.0
        %247 = vmatprep.subr.mxu0 0.0
        %248 = vmatpush1.msra.mxu0 0.0
        %249 = vmatprep.subr.mxu0 0.0
        %250 = vmatpush1.msra.mxu0 0.0
        %251 = vmatprep.subr.mxu0 0.0
        %252 = vmatpush1.msra.mxu0 0.0
        %253 = vmatprep.subr.mxu0 0.0
        %254 = vmatpush1.msra.mxu0 0.0
        %255 = vmatprep.subr.mxu0 0.0
        %256 = vmatpush1.msra.mxu0 0.0
        %257 = vmatprep.subr.mxu0 0.0
        %258 = vmatpush1.msra.mxu0 0.0
        %259 = vmatprep.subr.mxu0 0.0
        %260 = vmatpush1.msra.mxu0 0.0
        %261 = vmatprep.subr.mxu0 0.0
        %262 = vmatpush1.msra.mxu0 0.0
        %263 = vmatprep.subr.mxu0 0.0
        %264 = vmatpush1.msra.mxu0 0.0
        %265 = vmatprep.subr.mxu0 0.0
        %266 = vmatpush1.msra.mxu0 0.0
        %267 = vmatprep.subr.mxu0 0.0
        %268 = vmatpush1.msra.mxu0 0.0
        %269 = vmatprep.subr.mxu0 0.0
        %270 = vmatpush1.msra.mxu0 0.0
        %271 = vmatprep.subr.mxu0 0.0
        %272 = vmatpush1.msra.mxu0 0.0
        %273 = vmatprep.subr.mxu0 0.0
        %274 = vmatpush1.msra.mxu0 0.0
        %275 = vmatprep.subr.mxu0 0.0
        %276 = vmatpush1.msra.mxu0 0.0
        %277 = vmatprep.subr.mxu0 0.0
        %278 = vmatpush1.msra.mxu0 0.0
        %279 = vmatprep.subr.mxu0 0.0
        %280 = vmatpush1.msra.mxu0 0.0
        %281 = vmatprep.subr.mxu0 0.0
        %282 = vmatpush1.msra.mxu0 0.0
        %283 = vmatprep.mubr.f32.mxu0 0.0
        %284 = vmatmul.mubr.f32.gmra.mrb[0].mxu0 %v217
        %v285 = vpop.f32.mrb[0].mxu0
        %v286 = vadd.f32 0.0, %v285
        %v287 = vpop.f32.mrb[0].mxu0
        %288 = vdwg.mxu0
        %vm289 = vcmask 130048
        %v291 = vsel %vm289, %v286, 0
        %293 = vmatprep.subr.mxu0 0.0
        %294 = vmatpush1.msra.mxu0 %v213
        %295 = vmatprep.subr.mxu0 0.0
        %296 = vmatpush1.msra.mxu0 %v214
        %297 = vmatprep.subr.mxu0 0.0
        %298 = vmatpush1.msra.mxu0 0.0
        %299 = vmatprep.subr.mxu0 0.0
        %300 = vmatpush1.msra.mxu0 0.0
        %301 = vmatprep.subr.mxu0 0.0
        %302 = vmatpush1.msra.mxu0 0.0
        %303 = vmatprep.subr.mxu0 0.0
        %304 = vmatpush1.msra.mxu0 0.0
        %305 = vmatprep.subr.mxu0 0.0
        %306 = vmatpush1.msra.mxu0 0.0
        %307 = vmatprep.subr.mxu0 0.0
        %308 = vmatpush1.msra.mxu0 0.0
        %309 = vmatprep.subr.mxu0 0.0
        %310 = vmatpush1.msra.mxu0 0.0
        %311 = vmatprep.subr.mxu0 0.0
        %312 = vmatpush1.msra.mxu0 0.0
        %313 = vmatprep.subr.mxu0 0.0
        %314 = vmatpush1.msra.mxu0 0.0
        %315 = vmatprep.subr.mxu0 0.0
        %316 = vmatpush1.msra.mxu0 0.0
        %317 = vmatprep.subr.mxu0 0.0
        %318 = vmatpush1.msra.mxu0 0.0
        %319 = vmatprep.subr.mxu0 0.0
        %320 = vmatpush1.msra.mxu0 0.0
        %321 = vmatprep.subr.mxu0 0.0
        %322 = vmatpush1.msra.mxu0 0.0
        %323 = vmatprep.subr.mxu0 0.0
        %324 = vmatpush1.msra.mxu0 0.0
        %325 = vmatprep.subr.mxu0 0.0
        %326 = vmatpush1.msra.mxu0 0.0
        %327 = vmatprep.subr.mxu0 0.0
        %328 = vmatpush1.msra.mxu0 0.0
        %329 = vmatprep.subr.mxu0 0.0
        %330 = vmatpush1.msra.mxu0 0.0
        %331 = vmatprep.subr.mxu0 0.0
        %332 = vmatpush1.msra.mxu0 0.0
        %333 = vmatprep.subr.mxu0 0.0
        %334 = vmatpush1.msra.mxu0 0.0
        %335 = vmatprep.subr.mxu0 0.0
        %336 = vmatpush1.msra.mxu0 0.0
        %337 = vmatprep.subr.mxu0 0.0
        %338 = vmatpush1.msra.mxu0 0.0
        %339 = vmatprep.subr.mxu0 0.0
        %340 = vmatpush1.msra.mxu0 0.0
        %341 = vmatprep.subr.mxu0 0.0
        %342 = vmatpush1.msra.mxu0 0.0
        %343 = vmatprep.subr.mxu0 0.0
        %344 = vmatpush1.msra.mxu0 0.0
        %345 = vmatprep.subr.mxu0 0.0
        %346 = vmatpush1.msra.mxu0 0.0
        %347 = vmatprep.subr.mxu0 0.0
        %348 = vmatpush1.msra.mxu0 0.0
        %349 = vmatprep.subr.mxu0 0.0
        %350 = vmatpush1.msra.mxu0 0.0
        %351 = vmatprep.subr.mxu0 0.0
        %352 = vmatpush1.msra.mxu0 0.0
        %353 = vmatprep.subr.mxu0 0.0
        %354 = vmatpush1.msra.mxu0 0.0
        %355 = vmatprep.subr.mxu0 0.0
        %356 = vmatpush1.msra.mxu0 0.0
        %357 = vmatprep.mubr.f32.mxu0 0.0
        %358 = vmatmul.mubr.f32.gmra.mrb[0].mxu0 %v291
        %v359 = vpop.f32.mrb[0].mxu0
        %v360 = vadd.f32 0.0, %v359
        %v361 = vpop.f32.mrb[0].mxu0
        %362 = vdwg.mxu0
        %363 = vst.msk [vmem:[%s210] sm:$0xff] %vm289, %v360
        %s364 = sand.u32 %s95, 1
        %s365 = scalar_lea.sflag [#allocation4], %s364
        %s366 = sand.u32 %s95, 1
        %s367 = smul.addr %s366, 8
        %s368 = scalar_lea.vmem [#allocation8], %s367
        // Predicated region
        $region45: #{tpu_custom_call.1} parent=31 // pred_check
          %p369 = pneg %p105
        $region46: #{tpu_custom_call.1} parent=31 // pred_check_branch
          %371 = sbr.rel (%p369) target = $region48
        $region47: #{tpu_custom_call.1} parent=31 // pred_region
          %s373 = ssub.s32 128, 128
          %374 = vsyncadd %s365, %s373
          %s375 = smul.addr %s19, 128
          %s376 = scalar_lea.hbm %s3, %s375
          %s378 = sshll.u32 %s368, 4
          %s379 = int_to_ptr.vmem [resolvable:$true] %s378
          %381 = dma.vmem_to_hbm [thread:$0]  %s379, 128, %s376, %s365
        $region48: #{tpu_custom_call.1} parent=31 // pred_fallthru
          _
      $region32: #{tpu_custom_call.1} parent=5 // pred_fallthru
        _
      %p382 = scmp.le.s32.totalorder 2, %s14
      // Predicated region
      $region49: #{tpu_custom_call.1} parent=5 // pred_check
        %p383 = pneg %p382
      $region50: #{tpu_custom_call.1} parent=5 // pred_check_branch
        %385 = sbr.rel (%p383) target = $region52
      $region51: #{tpu_custom_call.1} parent=5 // pred_region
        %s386 = ssub.s32 %s14, 2
        // Predicated region
        $region53: #{tpu_custom_call.1} parent=51 // pred_check
          %p387 = pneg %p111
        $region54: #{tpu_custom_call.1} parent=51 // pred_check_branch
          %389 = sbr.rel (%p387) target = $region56
        $region55: #{tpu_custom_call.1} parent=51 // pred_region
          %s390 = sand.u32 %s96, 1
          %s391 = scalar_lea.sflag [#allocation4], %s390
          %s392 = sand.u32 %s96, 1
          %s393 = smul.addr %s392, 8
          %s394 = scalar_lea.vmem [#allocation8], %s393
          %395 = dma.done %s391, 128
        $region56: #{tpu_custom_call.1} parent=51 // pred_fallthru
          _
      $region52: #{tpu_custom_call.1} parent=5 // pred_fallthru
        _
    $region6: #{tpu_custom_call.1} parent=1 // loop_footer
      %s18 = sadd.s32 1, %s14
    $region7: #{tpu_custom_call.1} parent=1 // loop_footer_branch
      %13 = sbr.rel target = $region3
    $region8: #{tpu_custom_call.1} parent=1 // loop_exit
      _
    %396 = vsyncpa [#allocation3], 1
    %s397 = scalar_lea.sflag [#allocation3], 1
    %398 = vsyncpa %s397, 1
    %399 = vsyncpa [#allocation6], 1
    %400 = vsyncpa [#allocation4], 1
    %s401 = scalar_lea.sflag [#allocation4], 1
    %402 = vsyncpa %s401, 1

</llo_original>
